<compile_context>
chip_gen: v7x
topology: tpu7x:2x2x1
jax: 0.10.0
libtpu: 0.0.40
codegen_flags: <defaults>
</compile_context>

<pallas_src>
import bisect
import itertools
import math

import jax
import jax.numpy as jnp
from jax.experimental import pallas as pl
from jax.experimental.pallas import tpu as pltpu


_MiB = 1024 * 1024
# Per-step (double-buffered) VMEM budget used to size tiles.  This kernel is
# HBM-streaming bound; ~8 MiB/step already sits at the streaming-roofline
# plateau and leaves ample headroom under v7x's 64 MiB physical VMEM.
_TILE_VMEM_BUDGET = 8 * _MiB
# Scoped VMEM limit handed to Mosaic: above v5e's 16 MiB default, well below
# the ~40 MiB ceiling that is safe on v7x.
_VMEM_LIMIT_BYTES = 32 * _MiB


# ---------------------------------------------------------------------------
# Kernels
# ---------------------------------------------------------------------------

def _fusion_kernel(tile_type_ref, a1_ref, a2_ref, a3_ref, w_ref, out_ref,
                   attn_ref):
    """Score -> softmax(3) -> weighted sum for one (node-tile, batch) block.

    tile_type_ref : SMEM (n_tiles,) node-type id per node tile; consumed only
                    by the weight index_map, unused in the body.
    a{1,2,3}_ref  : (tn, D)  angle features (batch dim squeezed by BlockSpec)
    w_ref         : (1, D) float32 scorer row (resident / type-selected), or
                    (tn, D) per-node scorer weights (rare fallback)
    out_ref       : (tn, D)  fused output (input dtype)
    attn_ref      : (tn, 3)  softmax attention weights over the 3 modalities
    """
    del tile_type_ref
    f32 = jnp.float32
    w = w_ref[...]                       # float32; broadcasts over tn if (1, D)
    a1 = a1_ref[...]
    a2 = a2_ref[...]
    a3 = a3_ref[...]

    # score_k = <a_k, w>  (Linear(d_model, 1, bias=False)), computed in f32.
    # The casts are streaming: only one f32 (tn, D) temporary is live at a
    # time (no persistent f32 copies of the three input tiles).
    s1 = jnp.sum(a1.astype(f32) * w, axis=-1, keepdims=True)   # (tn, 1)
    s2 = jnp.sum(a2.astype(f32) * w, axis=-1, keepdims=True)
    s3 = jnp.sum(a3.astype(f32) * w, axis=-1, keepdims=True)

    # Softmax over the 3 modalities, in f32.
    m = jnp.maximum(jnp.maximum(s1, s2), s3)
    e1 = jnp.exp(s1 - m)
    e2 = jnp.exp(s2 - m)
    e3 = jnp.exp(s3 - m)
    # Exact reciprocal: the kernel is HBM-bound, the approximate EUP path buys
    # nothing and this keeps bit-level parity with the f32 reference.
    inv = pl.reciprocal(e1 + e2 + e3, approx=False)
    p1 = e1 * inv
    p2 = e2 * inv
    p3 = e3 * inv

    # matmul(attn_weight [.,1,3], angle_all [.,3,D]).squeeze(-2), done in the
    # input dtype (no f32 materialization of the big tiles).
    dt = out_ref.dtype
    fused = p1.astype(dt) * a1 + p2.astype(dt) * a2 + p3.astype(dt) * a3
    out_ref[...] = fused.astype(dt)
    # TODO(synk): attn is stored lane-narrow (last dim 3); it is tiny in bytes
    # and a lane-dense [B, 3, N] layout would need an in-kernel transpose.
    attn_ref[...] = jnp.concatenate([p1, p2, p3], axis=-1).astype(attn_ref.dtype)


def _add_kernel(a1_ref, a2_ref, a3_ref, out_ref):
    out_ref[...] = ((a1_ref[...] + a2_ref[...] + a3_ref[...]) / 3.0
                    ).astype(out_ref.dtype)


# ---------------------------------------------------------------------------
# Tile selection helpers (host-side, static)
# ---------------------------------------------------------------------------

def _largest_mult8_divisor(n, cap):
    """Largest multiple-of-8 divisor of `n` that is <= cap (0 if none)."""
    best = 0
    d = 8
    limit = min(n, cap)
    while d <= limit:
        if n % d == 0:
            best = d
        d += 8
    return best


def _pick_node_tile(batch, n_nodes, d_model, itemsize, base, min_steps=4):
    """Node tile for the fusion path: a multiple of 8 that divides `base`
    (the type-group gcd, or N itself), fits the per-step VMEM budget, and
    leaves >= min_steps grid steps so both v7x TensorCores get work."""
    per_node = (2 * 4 * d_model * itemsize   # 3 inputs + 1 output, double-buffered
                + 2 * d_model * itemsize     # (conservative) per-node weight tile
                + 2 * 128 * itemsize         # lane-padded attn tile, double-buffered
                + 2 * 4 * d_model)           # transient f32 score intermediates
    cap = max(8, _TILE_VMEM_BUDGET // per_node)
    tn = _largest_mult8_divisor(base, min(cap, base))
    if tn == 0:
        return 0
    while batch * (n_nodes // tn) < min_steps and tn > 8:
        smaller = _largest_mult8_divisor(base, tn // 2)
        if smaller < 8:
            break
        tn = smaller
    return tn


def _plan_fusion_tiles(batch, n_nodes, d_model, itemsize, group_lens, tn):
    """Returns (tn, use_table).  `use_table` selects the resident
    (num_types, 1, D) scorer table + scalar-prefetched type ids; otherwise an
    expanded per-node weight matrix is streamed instead (rare fallback)."""
    base = n_nodes if group_lens is None else math.gcd(*group_lens)
    if tn is not None:
        assert n_nodes % tn == 0, (n_nodes, tn)
        return tn, (group_lens is None) or (base % tn == 0)
    t = _pick_node_tile(batch, n_nodes, d_model, itemsize, base)
    if t:
        return t, True
    if group_lens is not None:
        # Type-group gcd is not 8-aligned: tiles cannot follow group boundaries,
        # fall back to per-node weights with N-based tiling.
        t = _pick_node_tile(batch, n_nodes, d_model, itemsize, n_nodes)
        if t:
            return t, False
    # TODO(synk): N with no multiple-of-8 divisor under the cap falls back to a
    # whole-N tile, which can exceed the nominal per-step budget for huge N.
    return n_nodes, group_lens is None


def _pick_add_layout(total, d_model, itemsize, min_steps=4):
    """Flattened (rows, cols) layout and row tile for the elementwise path."""
    cols = d_model
    for c in (2048, 1024, 512, 256, 128):
        if total % c == 0 and total // c >= 8:
            cols = c
            break
    else:
        for c in (2048, 1024, 512, 256, 128):
            if total % c == 0:
                cols = c
                break
    rows = total // cols
    per_row = 2 * 4 * cols * itemsize        # 3 inputs + 1 output, double-buffered
    cap = max(8, _TILE_VMEM_BUDGET // per_row)
    tr = _largest_mult8_divisor(rows, min(cap, rows))
    if tr == 0:
        tr = rows            # rows < 8 or not 8-divisible: take whole (legal)
    while rows // tr < min_steps and tr > 8:
        smaller = _largest_mult8_divisor(rows, tr // 2)
        if smaller < 8:
            break
        tr = smaller
    return rows, cols, tr


# ---------------------------------------------------------------------------
# Wrappers
# ---------------------------------------------------------------------------

def _attention_fusion(angle_1, angle_2, angle_3, w_table, group_lens=None,
                      tn=None):
    """w_table: (num_types, 1, D) float32 scorer table (num_types == 1 for the
    homogeneous 'angleFus' case)."""
    B, N, D = angle_1.shape
    dtype = angle_1.dtype
    itemsize = jnp.dtype(dtype).itemsize
    tn, use_table = _plan_fusion_tiles(B, N, D, itemsize, group_lens, tn)
    n_tiles = N // tn

    if use_table:
        if group_lens is None or w_table.shape[0] == 1:
            # Shared scorer: constant block index -> DMA'd once, stays resident.
            tile_type = jnp.zeros((n_tiles,), jnp.int32)   # keeps one kernel sig
            w_spec = pl.BlockSpec((None, 1, D), lambda n, b, tt: (0, 0, 0))
        else:
            # Heterogeneous scorers: the small (num_types, 1, D) table stays
            # resident; the scalar-prefetched per-tile type id picks the row.
            bounds = list(itertools.accumulate(group_lens))
            tile_type = jnp.asarray(
                [bisect.bisect_right(bounds, n * tn) for n in range(n_tiles)],
                jnp.int32)
            w_spec = pl.BlockSpec((None, 1, D), lambda n, b, tt: (tt[n], 0, 0))
        w = w_table
    else:
        # Rare fallback (type-group sizes not 8-aligned): expand the scorers to
        # a per-node weight matrix.  Kept in f32 for exact score parity.
        parts = [jnp.broadcast_to(w_table[i, 0, :], (ln, D))
                 for i, ln in enumerate(group_lens)]
        w = jnp.concatenate(parts, axis=0) if len(parts) > 1 else parts[0]
        tile_type = jnp.zeros((n_tiles,), jnp.int32)
        w_spec = pl.BlockSpec((tn, D), lambda n, b, tt: (n, 0))

    # Node tile outermost, batch innermost: the weight block index does not
    # change between consecutive steps, so its DMA is skipped across the batch.
    grid = (n_tiles, B)
    angle_spec = pl.BlockSpec((None, tn, D), lambda n, b, tt: (b, n, 0))
    attn_spec = pl.BlockSpec((None, tn, 3), lambda n, b, tt: (b, n, 0))

    out, attn = pl.pallas_call(
        _fusion_kernel,
        out_shape=(
            jax.ShapeDtypeStruct((B, N, D), dtype),
            jax.ShapeDtypeStruct((B, N, 3), dtype),
        ),
        grid_spec=pltpu.PrefetchScalarGridSpec(
            num_scalar_prefetch=1,
            grid=grid,
            in_specs=[angle_spec, angle_spec, angle_spec, w_spec],
            out_specs=[angle_spec, attn_spec],
        ),
        compiler_params=pltpu.CompilerParams(
            dimension_semantics=("parallel", "parallel"),
            vmem_limit_bytes=_VMEM_LIMIT_BYTES),
    )(tile_type, angle_1, angle_2, angle_3, w)

    # Match torch: attn_weight has shape [B, N, 1, 3].
    return out, attn.reshape(B, N, 1, 3)


def _add_fusion(angle_1, angle_2, angle_3):
    B, N, D = angle_1.shape
    dtype = angle_1.dtype
    itemsize = jnp.dtype(dtype).itemsize
    total = B * N * D
    rows, cols, tr = _pick_add_layout(total, D, itemsize)

    a1 = angle_1.reshape(rows, cols)
    a2 = angle_2.reshape(rows, cols)
    a3 = angle_3.reshape(rows, cols)

    spec = pl.BlockSpec((tr, cols), lambda r: (r, 0))
    out = pl.pallas_call(
        _add_kernel,
        out_shape=jax.ShapeDtypeStruct((rows, cols), dtype),
        grid_spec=pltpu.PrefetchScalarGridSpec(
            num_scalar_prefetch=0,
            grid=(rows // tr,),
            in_specs=[spec, spec, spec],
            out_specs=spec,
        ),
        compiler_params=pltpu.CompilerParams(
            dimension_semantics=("parallel",),
            vmem_limit_bytes=_VMEM_LIMIT_BYTES),
    )(a1, a2, a3)
    return out.reshape(B, N, D), None


class ModalityLabelFusion:
    """JAX/Pallas port of the PyTorch Modality_Label_Fusion module."""

    def __init__(self, d_model, fusion_type, num_types=1, node_type=None,
                 key=None):
        if key is None:
            key = jax.random.PRNGKey(0)
        self.fusion_type = fusion_type
        self.d_model = d_model
        self.num_types = num_types
        self.node_type = node_type

        bound = 1.0 / float(d_model) ** 0.5
        if fusion_type == "Heter_angleFus":
            keys = jax.random.split(key, num_types)
            # One Linear(d_model, 1, bias=False) per node type.  As in the torch
            # reference, only the *lengths* of node_type matter: scorer i is
            # applied to the i-th contiguous slice of nodes.
            rows = [jax.random.uniform(k, (d_model,), jnp.float32, -bound, bound)
                    for k in keys]
            self.w_table = jnp.stack(rows)[:, None, :]       # (num_types, 1, D)
            self.group_lens = [len(g) for g in node_type]
        elif fusion_type == "angleFus":
            # Single Linear(d_model, 1, bias=False), kept as a (1, 1, D) table so
            # the kernel keeps it resident in VMEM (no [N, D] broadcast in HBM).
            self.w_table = jax.random.uniform(
                key, (1, 1, d_model), jnp.float32, -bound, bound)
            self.group_lens = None
        elif fusion_type == "add":
            pass
        else:
            raise NotImplementedError(fusion_type)

    def __call__(self, angle_1, angle_2, angle_3, *, tn=None):
        B, N, D = angle_1.shape
        assert D == self.d_model
        if self.fusion_type == "add":
            return _add_fusion(angle_1, angle_2, angle_3)
        if self.fusion_type == "angleFus":
            return _attention_fusion(angle_1, angle_2, angle_3, self.w_table,
                                     group_lens=None, tn=tn)
        if self.fusion_type == "Heter_angleFus":
            assert sum(self.group_lens) == N, (
                "node_type groups must cover all N nodes")
            return _attention_fusion(angle_1, angle_2, angle_3, self.w_table,
                                     group_lens=self.group_lens, tn=tn)
        raise NotImplementedError(self.fusion_type)


# ---------------------------------------------------------------------------
# Pure-JAX reference (mirrors the PyTorch forward) for verification
# ---------------------------------------------------------------------------

def _ref_attention(angle_1, angle_2, angle_3, w_nodes):
    angle_all = jnp.stack([angle_1, angle_2, angle_3], axis=2)    # [B,N,3,D]
    angle_all = angle_all.astype(jnp.float32)
    score = jnp.einsum("bnkd,nd->bnk", angle_all,
                       w_nodes.astype(jnp.float32))               # [B,N,3]
    attn = jax.nn.softmax(score[:, :, None, :], axis=-1)          # [B,N,1,3]
    out = jnp.einsum("bnij,bnjd->bnid", attn, angle_all)[:, :, 0, :]
    return out, attn


if __name__ == "__main__":
    B, N, D = 2, 16, 128
    key = jax.random.PRNGKey(0)
    k1, k2, k3, kw = jax.random.split(key, 4)
    angle_1 = jax.random.normal(k1, (B, N, D), jnp.float32)
    angle_2 = jax.random.normal(k2, (B, N, D), jnp.float32)
    angle_3 = jax.random.normal(k3, (B, N, D), jnp.float32)

    # --- angleFus (shared scorer, resident (1, 1, D) weight) ---
    mod = ModalityLabelFusion(D, "angleFus", key=kw)
    out, attn = mod(angle_1, angle_2, angle_3)
    jax.block_until_ready(out)
    jax.block_until_ready(attn)
    w_nodes = jnp.broadcast_to(mod.w_table[0, 0], (N, D))
    ref_out, ref_attn = _ref_attention(angle_1, angle_2, angle_3, w_nodes)
    assert out.shape == (B, N, D) and attn.shape == (B, N, 1, 3)
    assert jnp.allclose(out, ref_out, atol=1e-5)
    assert jnp.allclose(attn, ref_attn, atol=1e-5)

    # --- Heter_angleFus (two node types; scalar-prefetched type ids) ---
    node_type = [list(range(0, 8)), list(range(8, 16))]
    mod_h = ModalityLabelFusion(D, "Heter_angleFus", num_types=2,
                                node_type=node_type, key=kw)
    out_h, attn_h = mod_h(angle_1, angle_2, angle_3)
    jax.block_until_ready(out_h)
    w_nodes_h = jnp.concatenate(
        [jnp.broadcast_to(mod_h.w_table[i, 0], (len(node_type[i]), D))
         for i in range(2)], axis=0)
    ref_out_h, ref_attn_h = _ref_attention(angle_1, angle_2, angle_3, w_nodes_h)
    assert jnp.allclose(out_h, ref_out_h, atol=1e-5)
    assert jnp.allclose(attn_h, ref_attn_h, atol=1e-5)

    # --- add (flattened, lane-dense elementwise path) ---
    mod_a = ModalityLabelFusion(D, "add")
    out_a, attn_a = mod_a(angle_1, angle_2, angle_3)
    jax.block_until_ready(out_a)
    assert attn_a is None
    assert jnp.allclose(out_a, (angle_1 + angle_2 + angle_3) / 3.0, atol=1e-5)

    # --- larger angleFus case: exercises bigger tiles + min-grid-step shrink ---
    B2, N2 = 2, 512
    kk = jax.random.split(key, 3)
    b1 = jax.random.normal(kk[0], (B2, N2, D), jnp.float32)
    b2 = jax.random.normal(kk[1], (B2, N2, D), jnp.float32)
    b3 = jax.random.normal(kk[2], (B2, N2, D), jnp.float32)
    out2, attn2 = mod(b1, b2, b3)
    jax.block_until_ready(out2)
    ref_out2, ref_attn2 = _ref_attention(
        b1, b2, b3, jnp.broadcast_to(mod.w_table[0, 0], (N2, D)))
    assert jnp.allclose(out2, ref_out2, atol=1e-5)
    assert jnp.allclose(attn2, ref_attn2, atol=1e-5)

    # --- bf16 inputs: scores/softmax in f32, weighted sum in bf16 ---
    c1 = b1.astype(jnp.bfloat16)
    c2 = b2.astype(jnp.bfloat16)
    c3 = b3.astype(jnp.bfloat16)
    out_bf, attn_bf = mod(c1, c2, c3)
    jax.block_until_ready(out_bf)
    ref_out_bf, ref_attn_bf = _ref_attention(
        c1, c2, c3, jnp.broadcast_to(mod.w_table[0, 0], (N2, D)))
    assert out_bf.dtype == jnp.bfloat16
    assert jnp.allclose(out_bf.astype(jnp.float32), ref_out_bf, atol=2e-1)
    assert jnp.allclose(attn_bf.astype(jnp.float32), ref_attn_bf, atol=5e-2)

    print("KERNEL_OK")
</pallas_src>

<mosaic_0001>
module attributes {stable_mosaic.version = 11 : i64} {
  func.func @_fusion_kernel(%arg0: i32, %arg1: i32, %arg2: memref<2xi32, #tpu.memory_space<smem>>, %arg3: memref<1x8x128xf32, #tpu.memory_space<vmem>>, %arg4: memref<1x8x128xf32, #tpu.memory_space<vmem>>, %arg5: memref<1x8x128xf32, #tpu.memory_space<vmem>>, %arg6: memref<1x1x128xf32, #tpu.memory_space<vmem>>, %arg7: memref<1x8x128xf32, #tpu.memory_space<vmem>>, %arg8: memref<1x8x3xf32, #tpu.memory_space<vmem>>) attributes {dimension_semantics = [#tpu.dimension_semantics<parallel>, #tpu.dimension_semantics<parallel>], iteration_bounds = array<i64: 2, 2>, scalar_prefetch = 1 : i64, scratch_operands = 0 : i64, tpu.core_type = #tpu.core_type<tc>, window_params = [{transform_indices = @transform_0, window_bounds = array<i64: 1, 8, 128>}, {transform_indices = @transform_1, window_bounds = array<i64: 1, 8, 128>}, {transform_indices = @transform_2, window_bounds = array<i64: 1, 8, 128>}, {pipeline_mode = #tpu.pipeline_mode<synchronous>, transform_indices = @transform_3, window_bounds = array<i64: 1, 1, 128>}, {transform_indices = @transform_4, window_bounds = array<i64: 1, 8, 128>}, {transform_indices = @transform_5, window_bounds = array<i64: 1, 8, 3>}]} {
    %c0 = arith.constant 0 : index
    %c0_0 = arith.constant 0 : index
    %c0_1 = arith.constant 0 : index
    %0 = vector.load %arg6[%c0, %c0_0, %c0_1] : memref<1x1x128xf32, #tpu.memory_space<vmem>>, vector<1x1x128xf32>
    %1 = vector.shape_cast %0 : vector<1x1x128xf32> to vector<1x128xf32>
    %c0_2 = arith.constant 0 : index
    %c0_3 = arith.constant 0 : index
    %c0_4 = arith.constant 0 : index
    %2 = vector.load %arg3[%c0_2, %c0_3, %c0_4] : memref<1x8x128xf32, #tpu.memory_space<vmem>>, vector<1x8x128xf32>
    %3 = vector.shape_cast %2 : vector<1x8x128xf32> to vector<8x128xf32>
    %c0_5 = arith.constant 0 : index
    %c0_6 = arith.constant 0 : index
    %c0_7 = arith.constant 0 : index
    %4 = vector.load %arg4[%c0_5, %c0_6, %c0_7] : memref<1x8x128xf32, #tpu.memory_space<vmem>>, vector<1x8x128xf32>
    %5 = vector.shape_cast %4 : vector<1x8x128xf32> to vector<8x128xf32>
    %c0_8 = arith.constant 0 : index
    %c0_9 = arith.constant 0 : index
    %c0_10 = arith.constant 0 : index
    %6 = vector.load %arg5[%c0_8, %c0_9, %c0_10] : memref<1x8x128xf32, #tpu.memory_space<vmem>>, vector<1x8x128xf32>
    %7 = vector.shape_cast %6 : vector<1x8x128xf32> to vector<8x128xf32>
    %8 = vector.broadcast %1 : vector<1x128xf32> to vector<8x128xf32>
    %9 = arith.mulf %3, %8 : vector<8x128xf32>
    %cst = arith.constant dense<0.000000e+00> : vector<8xf32>
    %10 = vector.multi_reduction <add>, %9, %cst [1] : vector<8x128xf32> to vector<8xf32>
    %11 = vector.shape_cast %10 : vector<8xf32> to vector<8x1xf32>
    %12 = vector.broadcast %1 : vector<1x128xf32> to vector<8x128xf32>
    %13 = arith.mulf %5, %12 : vector<8x128xf32>
    %cst_11 = arith.constant dense<0.000000e+00> : vector<8xf32>
    %14 = vector.multi_reduction <add>, %13, %cst_11 [1] : vector<8x128xf32> to vector<8xf32>
    %15 = vector.shape_cast %14 : vector<8xf32> to vector<8x1xf32>
    %16 = vector.broadcast %1 : vector<1x128xf32> to vector<8x128xf32>
    %17 = arith.mulf %7, %16 : vector<8x128xf32>
    %cst_12 = arith.constant dense<0.000000e+00> : vector<8xf32>
    %18 = vector.multi_reduction <add>, %17, %cst_12 [1] : vector<8x128xf32> to vector<8xf32>
    %19 = vector.shape_cast %18 : vector<8xf32> to vector<8x1xf32>
    %20 = arith.maximumf %11, %15 : vector<8x1xf32>
    %21 = arith.maximumf %20, %19 : vector<8x1xf32>
    %22 = arith.subf %11, %21 : vector<8x1xf32>
    %23 = math.exp %22 : vector<8x1xf32>
    %24 = arith.subf %15, %21 : vector<8x1xf32>
    %25 = math.exp %24 : vector<8x1xf32>
    %26 = arith.subf %19, %21 : vector<8x1xf32>
    %27 = math.exp %26 : vector<8x1xf32>
    %28 = arith.addf %23, %25 : vector<8x1xf32>
    %29 = arith.addf %28, %27 : vector<8x1xf32>
    %30 = tpu.reciprocal %29 : vector<8x1xf32> -> vector<8x1xf32>
    %31 = arith.mulf %23, %30 : vector<8x1xf32>
    %32 = arith.mulf %25, %30 : vector<8x1xf32>
    %33 = arith.mulf %27, %30 : vector<8x1xf32>
    %34 = vector.broadcast %31 : vector<8x1xf32> to vector<8x128xf32>
    %35 = arith.mulf %34, %3 : vector<8x128xf32>
    %36 = vector.broadcast %32 : vector<8x1xf32> to vector<8x128xf32>
    %37 = arith.mulf %36, %5 : vector<8x128xf32>
    %38 = arith.addf %35, %37 : vector<8x128xf32>
    %39 = vector.broadcast %33 : vector<8x1xf32> to vector<8x128xf32>
    %40 = arith.mulf %39, %7 : vector<8x128xf32>
    %41 = arith.addf %38, %40 : vector<8x128xf32>
    %c0_13 = arith.constant 0 : index
    %c0_14 = arith.constant 0 : index
    %c0_15 = arith.constant 0 : index
    %42 = vector.load %arg7[%c0_13, %c0_14, %c0_15] : memref<1x8x128xf32, #tpu.memory_space<vmem>>, vector<1x8x128xf32>
    %43 = vector.shape_cast %42 : vector<1x8x128xf32> to vector<8x128xf32>
    %44 = vector.shape_cast %41 : vector<8x128xf32> to vector<1x8x128xf32>
    tpu.vector_store %arg7[%c0_13, %c0_14, %c0_15], %44 {strides = array<i32>} : memref<1x8x128xf32, #tpu.memory_space<vmem>>, vector<1x8x128xf32>,
    %45 = tpu.concatenate %31, %32, %33 in 1 : vector<8x1xf32>, vector<8x1xf32>, vector<8x1xf32> -> vector<8x3xf32>
    %c0_16 = arith.constant 0 : index
    %c0_17 = arith.constant 0 : index
    %c0_18 = arith.constant 0 : index
    %46 = vector.load %arg8[%c0_16, %c0_17, %c0_18] : memref<1x8x3xf32, #tpu.memory_space<vmem>>, vector<1x8x3xf32>
    %47 = vector.shape_cast %46 : vector<1x8x3xf32> to vector<8x3xf32>
    %48 = vector.shape_cast %45 : vector<8x3xf32> to vector<1x8x3xf32>
    tpu.vector_store %arg8[%c0_16, %c0_17, %c0_18], %48 {strides = array<i32>} : memref<1x8x3xf32, #tpu.memory_space<vmem>>, vector<1x8x3xf32>,
    return
  }
  func.func @transform_0(%arg0: i32, %arg1: i32, %arg2: memref<2xi32, #tpu.memory_space<smem>>) -> (i32, i32, i32) {
    %c0_i32 = arith.constant 0 : i32
    %c0_i32_0 = arith.constant 0 : i32
    return %arg1, %arg0, %c0_i32 : i32, i32, i32
  }
  func.func @transform_1(%arg0: i32, %arg1: i32, %arg2: memref<2xi32, #tpu.memory_space<smem>>) -> (i32, i32, i32) {
    %c0_i32 = arith.constant 0 : i32
    %c0_i32_0 = arith.constant 0 : i32
    return %arg1, %arg0, %c0_i32 : i32, i32, i32
  }
  func.func @transform_2(%arg0: i32, %arg1: i32, %arg2: memref<2xi32, #tpu.memory_space<smem>>) -> (i32, i32, i32) {
    %c0_i32 = arith.constant 0 : i32
    %c0_i32_0 = arith.constant 0 : i32
    return %arg1, %arg0, %c0_i32 : i32, i32, i32
  }
  func.func @transform_3(%arg0: i32, %arg1: i32, %arg2: memref<2xi32, #tpu.memory_space<smem>>) -> (i32, i32, i32) {
    %c0_i32 = arith.constant 0 : i32
    %c0_i32_0 = arith.constant 0 : i32
    %c0_i32_1 = arith.constant 0 : i32
    %c0_i32_2 = arith.constant 0 : i32
    return %c0_i32, %c0_i32_0, %c0_i32_1 : i32, i32, i32
  }
  func.func @transform_4(%arg0: i32, %arg1: i32, %arg2: memref<2xi32, #tpu.memory_space<smem>>) -> (i32, i32, i32) {
    %c0_i32 = arith.constant 0 : i32
    %c0_i32_0 = arith.constant 0 : i32
    return %arg1, %arg0, %c0_i32 : i32, i32, i32
  }
  func.func @transform_5(%arg0: i32, %arg1: i32, %arg2: memref<2xi32, #tpu.memory_space<smem>>) -> (i32, i32, i32) {
    %c0_i32 = arith.constant 0 : i32
    %c0_i32_0 = arith.constant 0 : i32
    return %arg1, %arg0, %c0_i32 : i32, i32, i32
  }
}

</mosaic_0001>

<llo_original>
// kernel: tpu_custom_call.1
$region0: #{tpu_custom_call.1}
  #allocation0 [shape = 'u32[]', space=smem, size = 0x4, offset = 0x4, fixed_abs, tag = 'smem constant byte address 0x4 - core index']
  #allocation1 [shape = 'u32[144,128]{1,0:T(1,128)}', space=vmem, size = 0x12000, scoped, tag = 'internal scratch']
  #allocation2 [shape = 's32[1]{0}', space=sflag, size = 0x4, scoped, tag = 'scoped memory for tpu_custom_call.1']
  #allocation3 [shape = 'u8[512]{0}', space=smem, size = 0x200, scoped, tag = 'prefetched SMEM operand 0']
  %s0 = inlined_call_operand.hbm [shape: s32[2], index: 0, kind: input, shape index: {}]
  %s1 = inlined_call_operand.hbm [shape: f32[2,16,128], index: 1, kind: input, shape index: {}]
  %s2 = inlined_call_operand.hbm [shape: f32[2,16,128], index: 2, kind: input, shape index: {}]
  %s3 = inlined_call_operand.hbm [shape: f32[2,16,128], index: 3, kind: input, shape index: {}]
  %s4 = inlined_call_operand.vmem [shape: f32[1,1,128], index: 4, kind: input, shape index: {}]
  %s5 = inlined_call_operand.hbm [shape: f32[2,16,128], index: 5, kind: output, shape index: {0}]
  %s6 = inlined_call_operand.vmem [shape: f32[2,16,3], index: 6, kind: output, shape index: {1}]
  %7 = xla_tuple %s5, %s6
  %s8 = sld [smem:[#allocation0]]
  $region69: #{tpu_custom_call.1} parent=0
    _
  %s10 = ssub.s32 1, %s8
  %s11 = scalar_select 0, %s10, %s8
  %13 = dma.hbm_to_smem %s0, 16, [#allocation3], [#allocation2]
  %14 = dma.done [#allocation2], 16
  %15 = sfence
  $region1: #{tpu_custom_call.1} parent=0
    #allocation4 [shape = 'u8[8192]{0}', space=vmem, size = 0x2000, scoped, tag = 'input window, operand 1']
    #allocation5 [shape = 's32[2]{0}', space=sflag, size = 0x8, scoped, tag = 'scoped memory for tpu_custom_call.1']
    #allocation6 [shape = 's32[2]{0}', space=sflag, size = 0x8, scoped, tag = 'scoped memory for tpu_custom_call.1']
    #allocation7 [shape = 'u8[8192]{0}', space=vmem, size = 0x2000, scoped, tag = 'input window, operand 2']
    #allocation8 [shape = 's32[2]{0}', space=sflag, size = 0x8, scoped, tag = 'scoped memory for tpu_custom_call.1']
    #allocation9 [shape = 'u8[8192]{0}', space=vmem, size = 0x2000, scoped, tag = 'input window, operand 3']
    #allocation10 [shape = 'u8[8192]{0}', space=vmem, size = 0x2000, scoped, tag = 'output window, operand 0']
    %16 = vsyncpa [#allocation5], 0
    %s17 = scalar_lea.sflag [#allocation5], 1
    %18 = vsyncpa %s17, 0
    %19 = vsyncpa [#allocation8], 0
    %s20 = scalar_lea.sflag [#allocation8], 1
    %21 = vsyncpa %s20, 0
    %22 = vsyncpa [#allocation6], 0
    %s23 = scalar_lea.sflag [#allocation6], 1
    %24 = vsyncpa %s23, 0
    loop: start=0, step=1, limit=6
    $region2: #{tpu_custom_call.1} parent=1 // loop_pre_header
      _
    $region3: #{tpu_custom_call.1} parent=1 // loop_header
      %s26 = sphi 0, %s30
      %p27 = scmp.ge.s32.totalorder %s26, 6
      %s33 = sphi 0, %s45
      %s34 = sphi 0, %s41
      %s35 = sphi 0, %s33
      %s36 = sphi 0, %s34
      %s37 = sphi 0, %s35
      %s38 = sphi 0, %s36
      %s50 = sphi 0, %s52
      %s53 = sphi 0, %s50
      %s54 = sphi 0, %s53
      %s70 = sphi 0, %s54
      %s78 = sphi 0, %s80
      %s81 = sphi 0, %s78
      %s82 = sphi 0, %s81
      %s98 = sphi 0, %s82
      %s106 = sphi 0, %s108
      %s109 = sphi 0, %s106
      %s110 = sphi 0, %s109
      %s126 = sphi 0, %s110
      %s130 = sphi 0, %s130
      %s132 = sphi 0, %s130
      %s133 = sphi 0, %s132
      %s147 = sphi 0, %s133
      %s155 = sphi 0, %s157
      %s158 = sphi 0, %s155
      %s159 = sphi 0, %s158
      %s175 = sphi 0, %s159
      %s183 = sphi 0, %s185
      %s186 = sphi 0, %s183
      %s187 = sphi 0, %s186
      %s203 = sphi 0, %s187
    $region4: #{tpu_custom_call.1} parent=1 // loop_header_branch
      %29 = sbr.rel (%p27) target = $region8
    $region5: #{tpu_custom_call.1} parent=1 // loop_body
      %s31 = ssub.s32 %s26, 1
      %s32 = ssub.s32 %s26, 2
      %s39 = sadd.s32 1, %s34
      %p40 = scmp.ge.s32.totalorder %s39, 2
      %s41 = scalar_select %p40, 0, %s39
      %s42 = sadd.s32 1, %s33
      %s43 = scalar_select %p40, %s42, %s33
      %p44 = scmp.ge.s32.totalorder %s43, 2
      %s45 = scalar_select %p44, 0, %s43
      %s46 = ssub.s32 %s34, %s41
      %s47 = ssub.s32 %s33, %s45
      %s48 = sor.u32 %s46, %s47
      %p49 = scmp.eq.s32.totalorder %s48, 0
      %s51 = sadd.s32 %s50, 1
      %s52 = scalar_select %p49, %s50, %s51
      %p55 = pneg %p49
      %p56 = scmp.eq.s32.totalorder %s26, 3
      %p57 = por %p55, %p56
      %p58 = scmp.ne.s32.totalorder %s50, %s53
      %p59 = scmp.eq.s32.totalorder %s26, 0
      %p60 = por %p58, %p59
      %p61 = scmp.ne.s32.totalorder %s50, %s53
      %p62 = scmp.eq.s32.totalorder %s31, 3
      %p63 = por %p61, %p62
      %p64 = scmp.ne.s32.totalorder %s53, %s54
      %p65 = scmp.eq.s32.totalorder %s31, 0
      %p66 = por %p64, %p65
      %p67 = scmp.ne.s32.totalorder %s53, %s54
      %p68 = scmp.eq.s32.totalorder %s32, 3
      %p69 = por %p67, %p68
      %p71 = scmp.ne.s32.totalorder %s54, %s70
      %p72 = scmp.eq.s32.totalorder %s32, 0
      %p73 = por %p71, %p72
      %s74 = ssub.s32 %s34, %s41
      %s75 = ssub.s32 %s33, %s45
      %s76 = sor.u32 %s74, %s75
      %p77 = scmp.eq.s32.totalorder %s76, 0
      %s79 = sadd.s32 %s78, 1
      %s80 = scalar_select %p77, %s78, %s79
      %p83 = pneg %p77
      %p84 = scmp.eq.s32.totalorder %s26, 3
      %p85 = por %p83, %p84
      %p86 = scmp.ne.s32.totalorder %s78, %s81
      %p87 = scmp.eq.s32.totalorder %s26, 0
      %p88 = por %p86, %p87
      %p89 = scmp.ne.s32.totalorder %s78, %s81
      %p90 = scmp.eq.s32.totalorder %s31, 3
      %p91 = por %p89, %p90
      %p92 = scmp.ne.s32.totalorder %s81, %s82
      %p93 = scmp.eq.s32.totalorder %s31, 0
      %p94 = por %p92, %p93
      %p95 = scmp.ne.s32.totalorder %s81, %s82
      %p96 = scmp.eq.s32.totalorder %s32, 3
      %p97 = por %p95, %p96
      %p99 = scmp.ne.s32.totalorder %s82, %s98
      %p100 = scmp.eq.s32.totalorder %s32, 0
      %p101 = por %p99, %p100
      %s102 = ssub.s32 %s34, %s41
      %s103 = ssub.s32 %s33, %s45
      %s104 = sor.u32 %s102, %s103
      %p105 = scmp.eq.s32.totalorder %s104, 0
      %s107 = sadd.s32 %s106, 1
      %s108 = scalar_select %p105, %s106, %s107
      %p111 = pneg %p105
      %p112 = scmp.eq.s32.totalorder %s26, 3
      %p113 = por %p111, %p112
      %p114 = scmp.ne.s32.totalorder %s106, %s109
      %p115 = scmp.eq.s32.totalorder %s26, 0
      %p116 = por %p114, %p115
      %p117 = scmp.ne.s32.totalorder %s106, %s109
      %p118 = scmp.eq.s32.totalorder %s31, 3
      %p119 = por %p117, %p118
      %p120 = scmp.ne.s32.totalorder %s109, %s110
      %p121 = scmp.eq.s32.totalorder %s31, 0
      %p122 = por %p120, %p121
      %p123 = scmp.ne.s32.totalorder %s109, %s110
      %p124 = scmp.eq.s32.totalorder %s32, 3
      %p125 = por %p123, %p124
      %p127 = scmp.ne.s32.totalorder %s110, %s126
      %p128 = scmp.eq.s32.totalorder %s32, 0
      %p129 = por %p127, %p128
      %s131 = sadd.s32 %s130, 1
      %p134 = scmp.eq.s32.totalorder %s26, 3
      %p135 = scmp.ne.s32.totalorder %s130, %s132
      %p136 = scmp.eq.s32.totalorder %s26, 0
      %p137 = por %p135, %p136
      %p138 = scmp.ne.s32.totalorder %s130, %s132
      %p139 = scmp.eq.s32.totalorder %s31, 3
      %p140 = por %p138, %p139
      %p141 = scmp.ne.s32.totalorder %s132, %s133
      %p142 = scmp.eq.s32.totalorder %s31, 0
      %p143 = por %p141, %p142
      %p144 = scmp.ne.s32.totalorder %s132, %s133
      %p145 = scmp.eq.s32.totalorder %s32, 3
      %p146 = por %p144, %p145
      %p148 = scmp.ne.s32.totalorder %s133, %s147
      %p149 = scmp.eq.s32.totalorder %s32, 0
      %p150 = por %p148, %p149
      %s151 = ssub.s32 %s34, %s41
      %s152 = ssub.s32 %s33, %s45
      %s153 = sor.u32 %s151, %s152
      %p154 = scmp.eq.s32.totalorder %s153, 0
      %s156 = sadd.s32 %s155, 1
      %s157 = scalar_select %p154, %s155, %s156
      %p160 = pneg %p154
      %p161 = scmp.eq.s32.totalorder %s26, 3
      %p162 = por %p160, %p161
      %p163 = scmp.ne.s32.totalorder %s155, %s158
      %p164 = scmp.eq.s32.totalorder %s26, 0
      %p165 = por %p163, %p164
      %p166 = scmp.ne.s32.totalorder %s155, %s158
      %p167 = scmp.eq.s32.totalorder %s31, 3
      %p168 = por %p166, %p167
      %p169 = scmp.ne.s32.totalorder %s158, %s159
      %p170 = scmp.eq.s32.totalorder %s31, 0
      %p171 = por %p169, %p170
      %p172 = scmp.ne.s32.totalorder %s158, %s159
      %p173 = scmp.eq.s32.totalorder %s32, 3
      %p174 = por %p172, %p173
      %p176 = scmp.ne.s32.totalorder %s159, %s175
      %p177 = scmp.eq.s32.totalorder %s32, 0
      %p178 = por %p176, %p177
      %s179 = ssub.s32 %s34, %s41
      %s180 = ssub.s32 %s33, %s45
      %s181 = sor.u32 %s179, %s180
      %p182 = scmp.eq.s32.totalorder %s181, 0
      %s184 = sadd.s32 %s183, 1
      %s185 = scalar_select %p182, %s183, %s184
      %p188 = pneg %p182
      %p189 = scmp.eq.s32.totalorder %s26, 3
      %p190 = por %p188, %p189
      %p191 = scmp.ne.s32.totalorder %s183, %s186
      %p192 = scmp.eq.s32.totalorder %s26, 0
      %p193 = por %p191, %p192
      %p194 = scmp.ne.s32.totalorder %s183, %s186
      %p195 = scmp.eq.s32.totalorder %s31, 3
      %p196 = por %p194, %p195
      %p197 = scmp.ne.s32.totalorder %s186, %s187
      %p198 = scmp.eq.s32.totalorder %s31, 0
      %p199 = por %p197, %p198
      %p200 = scmp.ne.s32.totalorder %s186, %s187
      %p201 = scmp.eq.s32.totalorder %s32, 3
      %p202 = por %p200, %p201
      %p204 = scmp.ne.s32.totalorder %s187, %s203
      %p205 = scmp.eq.s32.totalorder %s32, 0
      %p206 = por %p204, %p205
      %p207 = scmp.le.s32.totalorder 1, %s26
      %p208 = scmp.lt.s32.totalorder %s26, 5
      %p209 = pnand %p207, %p208
      %p210 = pneg %p209
      // Predicated region
      $region9: #{tpu_custom_call.1} parent=5 // pred_check
        _
      $region10: #{tpu_custom_call.1} parent=5 // pred_check_branch
        %212 = sbr.rel (%p209) target = $region12
      $region11: #{tpu_custom_call.1} parent=5 // pred_region
        %s213 = ssub.s32 %s26, 1
        // Predicated region
        $region13: #{tpu_custom_call.1} parent=11 // pred_check
          %p214 = pneg %p143
        $region14: #{tpu_custom_call.1} parent=11 // pred_check_branch
          %216 = sbr.rel (%p214) target = $region16
        $region15: #{tpu_custom_call.1} parent=11 // pred_region
          _
        $region16: #{tpu_custom_call.1} parent=11 // pred_fallthru
          _
      $region12: #{tpu_custom_call.1} parent=5 // pred_fallthru
        _
      %p217 = scmp.lt.s32.totalorder %s26, 4
      // Predicated region
      $region17: #{tpu_custom_call.1} parent=5 // pred_check
        %p218 = pneg %p217
      $region18: #{tpu_custom_call.1} parent=5 // pred_check_branch
        %220 = sbr.rel (%p218) target = $region20
      $region19: #{tpu_custom_call.1} parent=5 // pred_region
        // Predicated region
        $region21: #{tpu_custom_call.1} parent=19 // pred_check
          %p221 = pneg %p60
        $region22: #{tpu_custom_call.1} parent=19 // pred_check_branch
          %223 = sbr.rel (%p221) target = $region24
        $region23: #{tpu_custom_call.1} parent=19 // pred_region
          %s224 = sand.u32 %s50, 1
          %s225 = scalar_lea.sflag [#allocation5], %s224
          %s226 = sand.u32 %s50, 1
          %s227 = smul.addr %s226, 8
          %s228 = scalar_lea.vmem [#allocation4], %s227
          %s230 = ssub.s32 128, 128
          %231 = vsyncadd %s225, %s230
          %s232 = smul.addr %s34, 2
          %s233 = sadd.s32 %s33, %s232
          %s234 = smul.addr %s233, 128
          %s235 = scalar_lea.hbm %s1, %s234
          %s237 = sshll.u32 %s228, 4
          %s238 = int_to_ptr.vmem [resolvable:$true] %s237
          %240 = dma.hbm_to_vmem [thread:$0]  %s235, 128, %s238, %s225
        $region24: #{tpu_custom_call.1} parent=19 // pred_fallthru
          _
        // Predicated region
        $region25: #{tpu_custom_call.1} parent=19 // pred_check
          %p241 = pneg %p88
        $region26: #{tpu_custom_call.1} parent=19 // pred_check_branch
          %243 = sbr.rel (%p241) target = $region28
        $region27: #{tpu_custom_call.1} parent=19 // pred_region
          %s244 = sand.u32 %s26, 1
          %s245 = scalar_lea.sflag [#allocation8], %s244
          %s246 = sand.u32 %s78, 1
          %s247 = smul.addr %s246, 8
          %s248 = scalar_lea.vmem [#allocation7], %s247
          %s250 = ssub.s32 128, 128
          %251 = vsyncadd %s245, %s250
          %s252 = smul.addr %s34, 2
          %s253 = sadd.s32 %s33, %s252
          %s254 = smul.addr %s253, 128
          %s255 = scalar_lea.hbm %s2, %s254
          %s257 = sshll.u32 %s248, 4
          %s258 = int_to_ptr.vmem [resolvable:$true] %s257
          %260 = dma.hbm_to_vmem [thread:$0]  %s255, 128, %s258, %s245
        $region28: #{tpu_custom_call.1} parent=19 // pred_fallthru
          _
        // Predicated region
        $region29: #{tpu_custom_call.1} parent=19 // pred_check
          %p261 = pneg %p116
        $region30: #{tpu_custom_call.1} parent=19 // pred_check_branch
          %263 = sbr.rel (%p261) target = $region32
        $region31: #{tpu_custom_call.1} parent=19 // pred_region
          %s264 = sand.u32 %s26, 1
          %s265 = scalar_lea.sflag [#allocation8], %s264
          %s266 = sand.u32 %s106, 1
          %s267 = smul.addr %s266, 8
          %s268 = scalar_lea.vmem [#allocation9], %s267
          %s270 = ssub.s32 128, 128
          %271 = vsyncadd %s265, %s270
          %s272 = smul.addr %s34, 2
          %s273 = sadd.s32 %s33, %s272
          %s274 = smul.addr %s273, 128
          %s275 = scalar_lea.hbm %s3, %s274
          %s277 = sshll.u32 %s268, 4
          %s278 = int_to_ptr.vmem [resolvable:$true] %s277
          %280 = dma.hbm_to_vmem [thread:$0]  %s275, 128, %s278, %s265
        $region32: #{tpu_custom_call.1} parent=19 // pred_fallthru
          _
      $region20: #{tpu_custom_call.1} parent=5 // pred_fallthru
        _
      %p281 = scmp.le.s32.totalorder 1, %s26
      %p282 = scmp.lt.s32.totalorder %s26, 5
      %p283 = pnand %p281, %p282
      %p284 = pneg %p283
      // Predicated region
      $region33: #{tpu_custom_call.1} parent=5 // pred_check
        _
      $region34: #{tpu_custom_call.1} parent=5 // pred_check_branch
        %286 = sbr.rel (%p283) target = $region36
      $region35: #{tpu_custom_call.1} parent=5 // pred_region
        %s287 = ssub.s32 %s26, 1
        %s288 = sand.u32 %s53, 1
        %s289 = scalar_lea.sflag [#allocation5], %s288
        %s290 = sand.u32 %s53, 1
        %s291 = smul.addr %s290, 8
        %s292 = scalar_lea.vmem [#allocation4], %s291
        // Predicated region
        $region37: #{tpu_custom_call.1} parent=35 // pred_check
          %p293 = pneg %p66
        $region38: #{tpu_custom_call.1} parent=35 // pred_check_branch
          %295 = sbr.rel (%p293) target = $region40
        $region39: #{tpu_custom_call.1} parent=35 // pred_region
          %296 = dma.done %s289, 128
        $region40: #{tpu_custom_call.1} parent=35 // pred_fallthru
          _
        %s297 = sand.u32 %s31, 1
        %s298 = scalar_lea.sflag [#allocation8], %s297
        %s299 = sand.u32 %s81, 1
        %s300 = smul.addr %s299, 8
        %s301 = scalar_lea.vmem [#allocation7], %s300
        // Predicated region
        $region41: #{tpu_custom_call.1} parent=35 // pred_check
          %p302 = pneg %p94
        $region42: #{tpu_custom_call.1} parent=35 // pred_check_branch
          %304 = sbr.rel (%p302) target = $region44
        $region43: #{tpu_custom_call.1} parent=35 // pred_region
          %305 = dma.done %s298, 128
        $region44: #{tpu_custom_call.1} parent=35 // pred_fallthru
          _
        %s306 = sand.u32 %s31, 1
        %s307 = scalar_lea.sflag [#allocation8], %s306
        %s308 = sand.u32 %s109, 1
        %s309 = smul.addr %s308, 8
        %s310 = scalar_lea.vmem [#allocation9], %s309
        // Predicated region
        $region45: #{tpu_custom_call.1} parent=35 // pred_check
          %p311 = pneg %p122
        $region46: #{tpu_custom_call.1} parent=35 // pred_check_branch
          %313 = sbr.rel (%p311) target = $region48
        $region47: #{tpu_custom_call.1} parent=35 // pred_region
          %314 = dma.done %s307, 128
        $region48: #{tpu_custom_call.1} parent=35 // pred_fallthru
          _
        %s315 = sand.u32 %s53, 1
        %s316 = scalar_lea.sflag [#allocation5], %s315
        %s317 = sand.u32 %s53, 1
        %s318 = smul.addr %s317, 8
        %s319 = scalar_lea.vmem [#allocation4], %s318
        %p320 = pneg %p66
        %p321 = pneg %p63
        %s322 = sand.u32 %s31, 1
        %s323 = scalar_lea.sflag [#allocation8], %s322
        %s324 = sand.u32 %s81, 1
        %s325 = smul.addr %s324, 8
        %s326 = scalar_lea.vmem [#allocation7], %s325
        %p327 = pneg %p94
        %p328 = pneg %p91
        %s329 = sand.u32 %s31, 1
        %s330 = scalar_lea.sflag [#allocation8], %s329
        %s331 = sand.u32 %s109, 1
        %s332 = smul.addr %s331, 8
        %s333 = scalar_lea.vmem [#allocation9], %s332
        %p334 = pneg %p122
        %p335 = pneg %p119
        %p336 = pneg %p143
        %p337 = pneg %p140
        %p338 = pneg %p171
        %p339 = pneg %p168
        %s340 = sand.u32 %s158, 1
        %s341 = scalar_lea.sflag [#allocation6], %s340
        %s342 = sand.u32 %s158, 1
        %s343 = smul.addr %s342, 8
        %s344 = scalar_lea.vmem [#allocation10], %s343
        %p345 = pneg %p199
        %p346 = pneg %p196
        %p347 = scmp.lt.s32.totalorder %s36, 1
        %s348 = scalar_select %p347, %s36, 1
        %p349 = scmp.lt.s32.totalorder %s35, 1
        %s350 = scalar_select %p349, %s35, 1
        %s351 = smul.addr %s348, 2
        %s352 = sadd.s32 %s350, %s351
        %s353 = smul.addr %s352, 8
        %s354 = scalar_lea.vmem %s6, %s353
        %p355 = scmp.lt.s32.totalorder %s36, 1
        %s356 = scalar_select %p355, %s36, 1
        %p357 = scmp.lt.s32.totalorder %s35, 1
        %s358 = scalar_select %p357, %s35, 1
        %s359 = smul.addr %s356, 2
        %s360 = sadd.s32 %s358, %s359
        %s361 = smul.addr %s360, 8
        %s362 = scalar_lea.vmem %s6, %s361
        %v363 = vld [vmem:[%s4] sm:$0x1]
        %v364 = vld [vmem:[%s292] sm:$0xff]
        %v365 = vld [vmem:[%s301] sm:$0xff]
        %v366 = vld [vmem:[%s310] sm:$0xff]
        %v368 = vlaneseq
        %v369 = vshrl.u32 %v368, 7
        %v370 = vsub.s32 0, %v369
        %v371 = vrot.slane %v363, %v370
        %v373 = vmul.f32 %v364, %v371
        %374 = vadd.xlane.f32.xlu0 %v373
        %v375 = vpop.xlane.xlu0 %374
        %v376 = vmul.f32 %v365, %v371
        %377 = vadd.xlane.f32.xlu0 %v376
        %v378 = vpop.xlane.xlu0 %377
        %v379 = vmul.f32 %v366, %v371
        %380 = vadd.xlane.f32.xlu0 %v379
        %v381 = vpop.xlane.xlu0 %380
        %v382 = vmax.f32 %v375, %v378
        %v383 = vmax.f32 %v382, %v381
        %v384 = vsub.f32 %v375, %v383
        %v385 = vmul.f32 %v384, 1.442695
        %v386 = vpow.pop %v385
        %v387 = vsub.f32 %v378, %v383
        %v388 = vmul.f32 %v387, 1.442695
        %v389 = vpow.pop %v388
        %v390 = vsub.f32 %v381, %v383
        %v391 = vmul.f32 %v390, 1.442695
        %v392 = vpow.pop %v391
        %v393 = vadd.f32 %v386, %v389
        %v394 = vadd.f32 %v393, %v392
        %v395 = vrcp.pop %v394
        %v396 = vmul.f32 %v386, %v395
        %v397 = vmul.f32 %v389, %v395
        %v398 = vmul.f32 %v392, %v395
        %v399 = vmul.f32 %v396, %v364
        %v400 = vmul.f32 %v397, %v365
        %v401 = vadd.f32 %v399, %v400
        %v402 = vmul.f32 %v398, %v366
        %v403 = vadd.f32 %v401, %v402
        %404 = vst [vmem:[%s344] sm:$0xff] %v403
        %vm405 = vcmask 7168
        %v406 = vsel %vm405, %v396, %v397
        %vm407 = vcmask 15360
        %v408 = vsel %vm407, %v406, %v398
        %vm409 = vcmask 23552
        %410 = vst.msk [vmem:[%s362] sm:$0xff] %vm409, %v408
        %s411 = sand.u32 %s158, 1
        %s412 = scalar_lea.sflag [#allocation6], %s411
        %s413 = sand.u32 %s158, 1
        %s414 = smul.addr %s413, 8
        %s415 = scalar_lea.vmem [#allocation10], %s414
        %p416 = scmp.lt.s32.totalorder %s36, 1
        %s417 = scalar_select %p416, %s36, 1
        %p418 = scmp.lt.s32.totalorder %s35, 1
        %s419 = scalar_select %p418, %s35, 1
        %s420 = smul.addr %s417, 2
        %s421 = sadd.s32 %s419, %s420
        %s422 = smul.addr %s421, 8
        %s423 = scalar_lea.vmem %s6, %s422
        // Predicated region
        $region49: #{tpu_custom_call.1} parent=35 // pred_check
          %p424 = pneg %p168
        $region50: #{tpu_custom_call.1} parent=35 // pred_check_branch
          %426 = sbr.rel (%p424) target = $region52
        $region51: #{tpu_custom_call.1} parent=35 // pred_region
          %s428 = ssub.s32 128, 128
          %429 = vsyncadd %s412, %s428
          %s430 = smul.addr %s36, 2
          %s431 = sadd.s32 %s35, %s430
          %s432 = smul.addr %s431, 128
          %s433 = scalar_lea.hbm %s5, %s432
          %s435 = sshll.u32 %s415, 4
          %s436 = int_to_ptr.vmem [resolvable:$true] %s435
          %438 = dma.vmem_to_hbm [thread:$0]  %s436, 128, %s433, %s412
        $region52: #{tpu_custom_call.1} parent=35 // pred_fallthru
          _
        // Predicated region
        $region53: #{tpu_custom_call.1} parent=35 // pred_check
          %p439 = pneg %p196
        $region54: #{tpu_custom_call.1} parent=35 // pred_check_branch
          %441 = sbr.rel (%p439) target = $region56
        $region55: #{tpu_custom_call.1} parent=35 // pred_region
          _
        $region56: #{tpu_custom_call.1} parent=35 // pred_fallthru
          _
      $region36: #{tpu_custom_call.1} parent=5 // pred_fallthru
        _
      %p442 = scmp.le.s32.totalorder 2, %s26
      // Predicated region
      $region57: #{tpu_custom_call.1} parent=5 // pred_check
        %p443 = pneg %p442
      $region58: #{tpu_custom_call.1} parent=5 // pred_check_branch
        %445 = sbr.rel (%p443) target = $region60
      $region59: #{tpu_custom_call.1} parent=5 // pred_region
        %s446 = ssub.s32 %s26, 2
        // Predicated region
        $region61: #{tpu_custom_call.1} parent=59 // pred_check
          %p447 = pneg %p174
        $region62: #{tpu_custom_call.1} parent=59 // pred_check_branch
          %449 = sbr.rel (%p447) target = $region64
        $region63: #{tpu_custom_call.1} parent=59 // pred_region
          %s450 = sand.u32 %s159, 1
          %s451 = scalar_lea.sflag [#allocation6], %s450
          %s452 = sand.u32 %s159, 1
          %s453 = smul.addr %s452, 8
          %s454 = scalar_lea.vmem [#allocation10], %s453
          %455 = dma.done %s451, 128
        $region64: #{tpu_custom_call.1} parent=59 // pred_fallthru
          _
        // Predicated region
        $region65: #{tpu_custom_call.1} parent=59 // pred_check
          %p456 = pneg %p202
        $region66: #{tpu_custom_call.1} parent=59 // pred_check_branch
          %458 = sbr.rel (%p456) target = $region68
        $region67: #{tpu_custom_call.1} parent=59 // pred_region
          %p459 = scmp.lt.s32.totalorder %s38, 1
          %s460 = scalar_select %p459, %s38, 1
          %p461 = scmp.lt.s32.totalorder %s37, 1
          %s462 = scalar_select %p461, %s37, 1
          %s463 = smul.addr %s460, 2
          %s464 = sadd.s32 %s462, %s463
          %s465 = smul.addr %s464, 8
          %s466 = scalar_lea.vmem %s6, %s465
        $region68: #{tpu_custom_call.1} parent=59 // pred_fallthru
          _
      $region60: #{tpu_custom_call.1} parent=5 // pred_fallthru
        _
    $region6: #{tpu_custom_call.1} parent=1 // loop_footer
      %s30 = sadd.s32 1, %s26
    $region7: #{tpu_custom_call.1} parent=1 // loop_footer_branch
      %25 = sbr.rel target = $region3
    $region8: #{tpu_custom_call.1} parent=1 // loop_exit
      _
    %467 = vsyncpa [#allocation5], 1
    %s468 = scalar_lea.sflag [#allocation5], 1
    %469 = vsyncpa %s468, 1
    %470 = vsyncpa [#allocation8], 1
    %s471 = scalar_lea.sflag [#allocation8], 1
    %472 = vsyncpa %s471, 1
    %473 = vsyncpa [#allocation6], 1
    %s474 = scalar_lea.sflag [#allocation6], 1
    %475 = vsyncpa %s474, 1

</llo_original>
